<compile_context>
chip_gen: v6e
topology: v6e:2x2x1
jax: 0.10.0
libtpu: 0.0.40
codegen_flags: <defaults>
</compile_context>

<pallas_src>
import functools
import math

import jax
import jax.numpy as jnp
import numpy as np
from jax.experimental import pallas as pl
from jax.experimental.pallas import tpu as pltpu

BN_EPS = 1e-5     # nn.BatchNorm1d default eps
REV_EPS = 1e-5    # RevIN eps (hard-coded to 1e-5 in the PyTorch module)


def _model_kernel(x_ref, aw_ref, ab_ref, iaw_ref,
                  wt_ref, bt_ref, sc_ref, sh_ref,
                  w1_ref, b1_ref, w2_ref, b2_ref,
                  wp_ref, bp_ref,
                  out_ref, *, layer_num, n_ch, ch_stride, compute_dtype):
    """One batch tile per grid step.

    Activations are a lane-dense (T, lanes) slab, lanes = n_ch * ch_stride
    (multiple of 128), channel-major lane packing: lane j = c*ch_stride + b.
      * time-mixing / temporal projection: lane-agnostic MXU matmuls
        (T,T)@(T,lanes) and (P,T)@(T,lanes), BatchNorm pre-folded into W/b.
      * feature-mixing (CxC): n_ch-1 lane rolls of stride ch_stride plus
        per-lane weight-row FMAs (XLU/VPU, idle during the time matmul);
        the full-lane wrap of the roll is exactly the mod-C channel wrap.
      * RevIN: per-lane stats over time; rsqrt + precomputed reciprocal rows,
        no divides.
    """
    f32 = jnp.float32
    x = x_ref[...].astype(f32)                                   # (T, lanes)

    # ---- RevIN 'norm' ----
    mean = jnp.mean(x, axis=0, keepdims=True)                    # (1, lanes)
    var = jnp.mean(jnp.square(x - mean), axis=0, keepdims=True)  # biased var
    inv_std = jax.lax.rsqrt(var + REV_EPS)
    z = (x - mean) * (inv_std * aw_ref[...]) + ab_ref[...]

    def mm(a, b):
        return jnp.dot(a.astype(compute_dtype), b.astype(compute_dtype),
                       preferred_element_type=f32)

    def feat_mix(v, w_rows, b_row):
        # w_rows: (n_ch, 1, lanes); shift-s term pairs roll(v, s*ch_stride)
        # with its precomputed per-lane weight row (built in the wrapper).
        acc = v * w_rows[0]
        for s in range(1, n_ch):
            acc = acc + pltpu.roll(v, shift=s * ch_stride, axis=1) * w_rows[s]
        return acc + b_row

    def layer(l, z):
        # -- time-mixing MLP (BN folded into wt/bt), ReLU, residual --
        y = mm(wt_ref[l], z) + bt_ref[l]                         # (T, lanes)
        z = jnp.maximum(y, 0.0) + z
        # -- feature-mixing MLP: BN as one FMA, CxC mix via rolls + FMAs --
        zn = z * sc_ref[l] + sh_ref[l]
        h = jnp.maximum(feat_mix(zn, w1_ref[l], b1_ref[l]), 0.0)
        return feat_mix(h, w2_ref[l], b2_ref[l]) + z

    if layer_num <= 4:
        # static unroll for typical TSMixer depths
        for l in range(layer_num):
            z = layer(l, z)
    else:
        # bound live ranges / VMEM pressure for deep stacks (dynamic
        # first-axis indexing of the per-layer weight refs).
        z = jax.lax.fori_loop(0, layer_num, layer, z)

    # ---- temporal projection seq_len -> pred_len ----
    o = mm(wp_ref[...], z) + bp_ref[...]                         # (P, lanes)

    # ---- RevIN 'denorm' (reciprocal affine precomputed in wrapper) ----
    stdev = jnp.sqrt(var + REV_EPS)
    o = (o - ab_ref[...]) * (iaw_ref[...] * stdev) + mean
    out_ref[...] = o.astype(out_ref.dtype)                       # lane-dense store


def model_forward(x, p, *, compute_dtype=jnp.bfloat16, batch_tile=None):
    """Eval-mode forward of `Model` (RevIN -> Backbone -> RevIN^-1)."""
    B, T, C = x.shape
    P = p["wp"].shape[0]
    L = p["wt"].shape[0]
    f32 = jnp.float32

    # ---- per-generation sizing: v7x has 64 MiB VMEM, v5e/v6e have 128 MiB ----
    try:
        vmem_cap = int(pltpu.get_tpu_info().vmem_capacity_bytes)
    except Exception:
        vmem_cap = 64 * 1024 * 1024
    vmem_limit = int(min(vmem_cap * 3 // 4, 96 * 1024 * 1024))
    target_lanes = 256 if vmem_cap <= 64 * 1024 * 1024 else 512

    def rup(a, m):
        return -(-a // m) * m

    # Batch tile: smallest Bt keeping lanes = Bt*C a multiple of 128 (full
    # vreg / unmasked vst), aiming for >=2 grid steps (v7x megacore) when the
    # batch allows it, capped at ~target_lanes per step.
    bt_unit = 128 // math.gcd(C, 128)
    if batch_tile is None:
        target_bt = max(bt_unit, (max(bt_unit, target_lanes // C) // bt_unit) * bt_unit)
        if B <= bt_unit:
            Bt = bt_unit
        else:
            Bt = max(bt_unit, min(target_bt, rup(rup(B, 2) // 2, bt_unit)))
    else:
        Bt = rup(int(batch_tile), bt_unit)
    nb = rup(B, Bt) // Bt
    Bpad = nb * Bt
    lanes = Bt * C
    if Bpad != B:
        x = jnp.pad(x, ((0, Bpad - B), (0, 0), (0, 0)))

    # Channel-major lane packing: x2[n, t, c*Bt + b] = x[n*Bt + b, t, c].
    x2 = x.reshape(nb, Bt, T, C).transpose(0, 2, 3, 1).reshape(nb, T, lanes)

    # ---- fold BatchNorm (eval mode): fully into wt, one FMA for feature branch ----
    scale = p["bn_g"] * jax.lax.rsqrt(p["bn_v"] + BN_EPS)        # (L, T, 1)
    shift = p["bn_b"] - p["bn_m"] * scale                        # (L, T, 1)
    wt_f = p["wt"] * scale.transpose(0, 2, 1)                    # (L, T, T)
    bt_f = jnp.einsum("lts,lsz->ltz", p["wt"], shift) + p["bt"]  # (L, T, 1)

    # ---- feature MLP (CxC) as per-lane weight rows for the roll+FMA mix ----
    d_idx = np.arange(lanes) // Bt            # output channel of each lane

    def mix_rows(w_in_out):                   # (L, C, C) stored (in, out)
        rows = [w_in_out[:, (d_idx - s) % C, d_idx] for s in range(C)]
        return jnp.stack(rows, axis=1).reshape(L, C, 1, lanes).astype(f32)

    w1_rows = mix_rows(p["wf1t"])
    w2_rows = mix_rows(p["wf2t"])
    b1_rows = p["bf1"][:, d_idx].reshape(L, 1, lanes).astype(f32)
    b2_rows = p["bf2"][:, d_idx].reshape(L, 1, lanes).astype(f32)

    # ---- RevIN affine rows in the packed lane layout (+ precomputed reciprocal) ----
    aw = p["rev_w"][d_idx].reshape(1, lanes).astype(f32)
    ab = p["rev_b"][d_idx].reshape(1, lanes).astype(f32)
    iaw = (1.0 / (p["rev_w"] + REV_EPS * REV_EPS))[d_idx].reshape(1, lanes).astype(f32)

    cd = compute_dtype   # bf16 matmul operands: native MXU rate, half weight DMA
    args = (x2,
            aw, ab, iaw,
            wt_f.astype(cd), bt_f.astype(f32),
            scale.astype(f32), shift.astype(f32),
            w1_rows, b1_rows, w2_rows, b2_rows,
            p["wp"].astype(cd), p["bp"].astype(f32))

    # Constant-index whole-array blocks are never re-fetched across grid steps;
    # with the block-diag feature weights gone their (double-buffered) VMEM
    # footprint is negligible, so default buffering is fine.
    def const_spec(a):
        return pl.BlockSpec(a.shape, lambda i, nd=a.ndim: (0,) * nd)

    in_specs = ([pl.BlockSpec((None, T, lanes), lambda i: (i, 0, 0))]
                + [const_spec(a) for a in args[1:]])

    kernel = functools.partial(_model_kernel, layer_num=L, n_ch=C,
                               ch_stride=Bt, compute_dtype=cd)

    # Advisory cost estimate so XLA schedules the (jit-fused) pack/unpack
    # transposes correctly around the custom call.
    isz = lambda a: jnp.dtype(a.dtype).itemsize
    mm_flops = 2 * L * T * T * lanes + 2 * P * T * lanes
    feat_flops = 4 * L * C * T * lanes
    ew_flops = (14 * L + 16) * T * lanes
    const_bytes = sum(int(np.prod(a.shape)) * isz(a) for a in args[1:])
    ce = pl.CostEstimate(
        flops=int(nb * (mm_flops + feat_flops + ew_flops)),
        transcendentals=int(nb * 2 * lanes),
        bytes_accessed=int(nb * (T + P) * lanes * isz(x2) + const_bytes),
    )

    out2 = pl.pallas_call(
        kernel,
        out_shape=jax.ShapeDtypeStruct((nb, P, lanes), x.dtype),
        grid=(nb,),
        in_specs=in_specs,
        out_specs=pl.BlockSpec((None, P, lanes), lambda i: (i, 0, 0)),
        compiler_params=pltpu.CompilerParams(
            dimension_semantics=("parallel",),
            vmem_limit_bytes=vmem_limit),
        cost_estimate=ce,
    )(*args)

    # Unpack the lane-dense (P, lanes) slabs back to (B, P, C).
    out = out2.reshape(nb, P, C, Bt).transpose(0, 3, 1, 2).reshape(Bpad, P, C)
    return out[:B]


def init_params(key, seq_len, pred_len, layer_num, enc_in):
    ks = jax.random.split(key, 14)
    T, P, L, C = seq_len, pred_len, layer_num, enc_in
    n = jax.random.normal
    return {
        # BatchNorm1d(time_dim) per layer — affine + running stats
        "bn_g": 1.0 + 0.1 * n(ks[0], (L, T, 1), jnp.float32),
        "bn_b": 0.1 * n(ks[1], (L, T, 1), jnp.float32),
        "bn_m": 0.2 * n(ks[2], (L, T, 1), jnp.float32),
        "bn_v": 0.5 + 0.5 * jnp.abs(n(ks[3], (L, T, 1), jnp.float32)),
        # Mlp_time.fc1: Linear(T, T); weight (out, in) used as y = W @ x_time
        "wt": 0.1 * n(ks[4], (L, T, T), jnp.float32),
        "bt": 0.1 * n(ks[5], (L, T, 1), jnp.float32),
        # Mlp_feat.fc1 / fc2: Linear(C, C); stored pre-transposed (in, out)
        "wf1t": 0.1 * n(ks[6], (L, C, C), jnp.float32),
        "bf1": 0.1 * n(ks[7], (L, C), jnp.float32),
        "wf2t": 0.1 * n(ks[8], (L, C, C), jnp.float32),
        "bf2": 0.1 * n(ks[9], (L, C), jnp.float32),
        # temp_proj: Linear(T, P), weight (P, T)
        "wp": 0.1 * n(ks[10], (P, T), jnp.float32),
        "bp": 0.1 * n(ks[11], (P, 1), jnp.float32),
        # RevIN affine (ones/zeros in PyTorch init; perturbed for a real test)
        "rev_w": 1.0 + 0.1 * n(ks[12], (C,), jnp.float32),
        "rev_b": 0.1 * n(ks[13], (C,), jnp.float32),
    }


def reference(x, p):
    """Pure-JAX reference matching the PyTorch eval-mode Model.forward."""
    mean = jnp.mean(x, axis=1, keepdims=True)
    var = jnp.mean((x - mean) ** 2, axis=1, keepdims=True)
    stdev = jnp.sqrt(var + REV_EPS)
    z = (x - mean) / stdev * p["rev_w"] + p["rev_b"]

    L = p["wt"].shape[0]
    scale = p["bn_g"] / jnp.sqrt(p["bn_v"] + BN_EPS)      # (L, T, 1)
    shift = p["bn_b"] - p["bn_m"] * scale
    for l in range(L):
        def bn(u, l=l):
            return u * scale[l][None] + shift[l][None]
        res1 = z
        y = jnp.einsum("ts,bsc->btc", p["wt"][l], bn(z)) + p["bt"][l][None]
        z = jnp.maximum(y, 0.0) + res1
        res2 = z
        zn = bn(z)
        h = jnp.maximum(jnp.einsum("btc,cd->btd", zn, p["wf1t"][l]) + p["bf1"][l], 0.0)
        z = jnp.einsum("btd,de->bte", h, p["wf2t"][l]) + p["bf2"][l] + res2
    o = jnp.einsum("pt,btc->bpc", p["wp"], z) + p["bp"][None]

    o = (o - p["rev_b"]) / (p["rev_w"] + REV_EPS * REV_EPS)
    o = o * stdev + mean
    return o


if __name__ == "__main__":
    key = jax.random.PRNGKey(0)

    B, seq_len, pred_len, layer_num, enc_in = 2, 16, 8, 2, 4
    kx, kp, kx2 = jax.random.split(key, 3)
    x = jax.random.normal(kx, (B, seq_len, enc_in), jnp.float32)
    params = init_params(kp, seq_len, pred_len, layer_num, enc_in)

    ref = jax.block_until_ready(reference(x, params))

    # Default path: bf16 matmul operands, f32 accumulation / elementwise.
    fwd_bf16 = jax.jit(model_forward)
    out = jax.block_until_ready(fwd_bf16(x, params))
    assert out.shape == (B, pred_len, enc_in), out.shape
    np.testing.assert_allclose(np.asarray(out), np.asarray(ref), rtol=5e-2, atol=5e-2)

    # f32 matmul path (tight check of the kernel math).
    fwd_f32 = jax.jit(functools.partial(model_forward, compute_dtype=jnp.float32))
    out32 = jax.block_until_ready(fwd_f32(x, params))
    np.testing.assert_allclose(np.asarray(out32), np.asarray(ref), rtol=1e-2, atol=1e-2)

    # Larger batch: exercises the multi-tile (>=2 parallel grid steps) path
    # plus batch padding to the lane-dense tile size.
    B2 = 80
    x_big = jax.random.normal(kx2, (B2, seq_len, enc_in), jnp.float32)
    ref_big = jax.block_until_ready(reference(x_big, params))
    out_big = jax.block_until_ready(fwd_bf16(x_big, params))
    np.testing.assert_allclose(np.asarray(out_big), np.asarray(ref_big),
                               rtol=5e-2, atol=5e-2)

    print("KERNEL_OK")
</pallas_src>

<mosaic_0001>
module attributes {stable_mosaic.version = 11 : i64} {
  func.func @_model_kernel(%arg0: i32, %arg1: memref<1x16x128xf32, #tpu.memory_space<vmem>>, %arg2: memref<1x128xf32, #tpu.memory_space<vmem>>, %arg3: memref<1x128xf32, #tpu.memory_space<vmem>>, %arg4: memref<1x128xf32, #tpu.memory_space<vmem>>, %arg5: memref<2x16x16xbf16, #tpu.memory_space<vmem>>, %arg6: memref<2x16x1xf32, #tpu.memory_space<vmem>>, %arg7: memref<2x16x1xf32, #tpu.memory_space<vmem>>, %arg8: memref<2x16x1xf32, #tpu.memory_space<vmem>>, %arg9: memref<2x4x1x128xf32, #tpu.memory_space<vmem>>, %arg10: memref<2x1x128xf32, #tpu.memory_space<vmem>>, %arg11: memref<2x4x1x128xf32, #tpu.memory_space<vmem>>, %arg12: memref<2x1x128xf32, #tpu.memory_space<vmem>>, %arg13: memref<8x16xbf16, #tpu.memory_space<vmem>>, %arg14: memref<8x1xf32, #tpu.memory_space<vmem>>, %arg15: memref<1x8x128xf32, #tpu.memory_space<vmem>>) attributes {dimension_semantics = [#tpu.dimension_semantics<parallel>], iteration_bounds = array<i64: 1>, scalar_prefetch = 0 : i64, scratch_operands = 0 : i64, tpu.core_type = #tpu.core_type<tc>, window_params = [{transform_indices = @transform_0, window_bounds = array<i64: 1, 16, 128>}, {pipeline_mode = #tpu.pipeline_mode<synchronous>, transform_indices = @transform_1, window_bounds = array<i64: 1, 128>}, {pipeline_mode = #tpu.pipeline_mode<synchronous>, transform_indices = @transform_2, window_bounds = array<i64: 1, 128>}, {pipeline_mode = #tpu.pipeline_mode<synchronous>, transform_indices = @transform_3, window_bounds = array<i64: 1, 128>}, {pipeline_mode = #tpu.pipeline_mode<synchronous>, transform_indices = @transform_4, window_bounds = array<i64: 2, 16, 16>}, {pipeline_mode = #tpu.pipeline_mode<synchronous>, transform_indices = @transform_5, window_bounds = array<i64: 2, 16, 1>}, {pipeline_mode = #tpu.pipeline_mode<synchronous>, transform_indices = @transform_6, window_bounds = array<i64: 2, 16, 1>}, {pipeline_mode = #tpu.pipeline_mode<synchronous>, transform_indices = @transform_7, window_bounds = array<i64: 2, 16, 1>}, {pipeline_mode = #tpu.pipeline_mode<synchronous>, transform_indices = @transform_8, window_bounds = array<i64: 2, 4, 1, 128>}, {pipeline_mode = #tpu.pipeline_mode<synchronous>, transform_indices = @transform_9, window_bounds = array<i64: 2, 1, 128>}, {pipeline_mode = #tpu.pipeline_mode<synchronous>, transform_indices = @transform_10, window_bounds = array<i64: 2, 4, 1, 128>}, {pipeline_mode = #tpu.pipeline_mode<synchronous>, transform_indices = @transform_11, window_bounds = array<i64: 2, 1, 128>}, {pipeline_mode = #tpu.pipeline_mode<synchronous>, transform_indices = @transform_12, window_bounds = array<i64: 8, 16>}, {pipeline_mode = #tpu.pipeline_mode<synchronous>, transform_indices = @transform_13, window_bounds = array<i64: 8, 1>}, {transform_indices = @transform_14, window_bounds = array<i64: 1, 8, 128>}]} {
    %c0 = arith.constant 0 : index
    %c0_0 = arith.constant 0 : index
    %c0_1 = arith.constant 0 : index
    %0 = vector.load %arg1[%c0, %c0_0, %c0_1] : memref<1x16x128xf32, #tpu.memory_space<vmem>>, vector<1x16x128xf32>
    %1 = vector.shape_cast %0 : vector<1x16x128xf32> to vector<16x128xf32>
    %cst = arith.constant dense<0.000000e+00> : vector<128xf32>
    %2 = vector.multi_reduction <add>, %1, %cst [0] : vector<16x128xf32> to vector<128xf32>
    %3 = vector.shape_cast %2 : vector<128xf32> to vector<1x128xf32>
    %cst_2 = arith.constant 1.600000e+01 : f32
    %4 = vector.broadcast %cst_2 : f32 to vector<1x128xf32>
    %5 = arith.divf %3, %4 : vector<1x128xf32>
    %6 = vector.broadcast %5 : vector<1x128xf32> to vector<16x128xf32>
    %7 = arith.subf %1, %6 : vector<16x128xf32>
    %8 = arith.mulf %7, %7 : vector<16x128xf32>
    %cst_3 = arith.constant dense<0.000000e+00> : vector<128xf32>
    %9 = vector.multi_reduction <add>, %8, %cst_3 [0] : vector<16x128xf32> to vector<128xf32>
    %10 = vector.shape_cast %9 : vector<128xf32> to vector<1x128xf32>
    %cst_4 = arith.constant 1.600000e+01 : f32
    %11 = vector.broadcast %cst_4 : f32 to vector<1x128xf32>
    %12 = arith.divf %10, %11 : vector<1x128xf32>
    %cst_5 = arith.constant 9.99999974E-6 : f32
    %13 = vector.broadcast %cst_5 : f32 to vector<1x128xf32>
    %14 = arith.addf %12, %13 : vector<1x128xf32>
    %15 = math.rsqrt %14 : vector<1x128xf32>
    %16 = vector.broadcast %5 : vector<1x128xf32> to vector<16x128xf32>
    %17 = arith.subf %1, %16 : vector<16x128xf32>
    %c0_6 = arith.constant 0 : index
    %c0_7 = arith.constant 0 : index
    %18 = vector.load %arg2[%c0_6, %c0_7] : memref<1x128xf32, #tpu.memory_space<vmem>>, vector<1x128xf32>
    %19 = arith.mulf %15, %18 : vector<1x128xf32>
    %20 = vector.broadcast %19 : vector<1x128xf32> to vector<16x128xf32>
    %21 = arith.mulf %17, %20 : vector<16x128xf32>
    %c0_8 = arith.constant 0 : index
    %c0_9 = arith.constant 0 : index
    %22 = vector.load %arg3[%c0_8, %c0_9] : memref<1x128xf32, #tpu.memory_space<vmem>>, vector<1x128xf32>
    %23 = vector.broadcast %22 : vector<1x128xf32> to vector<16x128xf32>
    %24 = arith.addf %21, %23 : vector<16x128xf32>
    %c0_10 = arith.constant 0 : index
    %c0_11 = arith.constant 0 : index
    %c0_12 = arith.constant 0 : index
    %25 = vector.load %arg5[%c0_10, %c0_11, %c0_12] : memref<2x16x16xbf16, #tpu.memory_space<vmem>>, vector<1x16x16xbf16>
    %26 = vector.shape_cast %25 : vector<1x16x16xbf16> to vector<16x16xbf16>
    %27 = arith.truncf %24 : vector<16x128xf32> to vector<16x128xbf16>
    %cst_13 = arith.constant dense<0.000000e+00> : vector<16x128xf32>
    %28 = tpu.matmul %26, %27, %cst_13 {dimension_numbers = #tpu.dot_dimension_numbers<[1], [0], [0], [1], [0, 0, 1, 1], [], []>} : vector<16x16xbf16>, vector<16x128xbf16>, vector<16x128xf32> -> vector<16x128xf32>
    %c0_14 = arith.constant 0 : index
    %c0_15 = arith.constant 0 : index
    %c0_16 = arith.constant 0 : index
    %29 = vector.load %arg6[%c0_14, %c0_15, %c0_16] : memref<2x16x1xf32, #tpu.memory_space<vmem>>, vector<1x16x1xf32>
    %30 = vector.shape_cast %29 : vector<1x16x1xf32> to vector<16x1xf32>
    %31 = vector.broadcast %30 : vector<16x1xf32> to vector<16x128xf32>
    %32 = arith.addf %28, %31 : vector<16x128xf32>
    %cst_17 = arith.constant 0.000000e+00 : f32
    %33 = vector.broadcast %cst_17 : f32 to vector<16x128xf32>
    %34 = arith.maximumf %32, %33 : vector<16x128xf32>
    %35 = arith.addf %34, %24 : vector<16x128xf32>
    %c0_18 = arith.constant 0 : index
    %c0_19 = arith.constant 0 : index
    %c0_20 = arith.constant 0 : index
    %36 = vector.load %arg7[%c0_18, %c0_19, %c0_20] : memref<2x16x1xf32, #tpu.memory_space<vmem>>, vector<1x16x1xf32>
    %37 = vector.shape_cast %36 : vector<1x16x1xf32> to vector<16x1xf32>
    %38 = vector.broadcast %37 : vector<16x1xf32> to vector<16x128xf32>
    %39 = arith.mulf %35, %38 : vector<16x128xf32>
    %c0_21 = arith.constant 0 : index
    %c0_22 = arith.constant 0 : index
    %c0_23 = arith.constant 0 : index
    %40 = vector.load %arg8[%c0_21, %c0_22, %c0_23] : memref<2x16x1xf32, #tpu.memory_space<vmem>>, vector<1x16x1xf32>
    %41 = vector.shape_cast %40 : vector<1x16x1xf32> to vector<16x1xf32>
    %42 = vector.broadcast %41 : vector<16x1xf32> to vector<16x128xf32>
    %43 = arith.addf %39, %42 : vector<16x128xf32>
    %c0_24 = arith.constant 0 : index
    %c0_25 = arith.constant 0 : index
    %c0_26 = arith.constant 0 : index
    %c0_27 = arith.constant 0 : index
    %44 = vector.load %arg9[%c0_24, %c0_25, %c0_26, %c0_27] : memref<2x4x1x128xf32, #tpu.memory_space<vmem>>, vector<1x4x1x128xf32>
    %45 = vector.shape_cast %44 : vector<1x4x1x128xf32> to vector<4x1x128xf32>
    %c0_28 = arith.constant 0 : index
    %c0_29 = arith.constant 0 : index
    %c0_30 = arith.constant 0 : index
    %46 = vector.load %arg10[%c0_28, %c0_29, %c0_30] : memref<2x1x128xf32, #tpu.memory_space<vmem>>, vector<1x1x128xf32>
    %47 = vector.shape_cast %46 : vector<1x1x128xf32> to vector<1x128xf32>
    %48 = vector.extract_strided_slice %45 {offsets = [0, 0, 0], sizes = [1, 1, 128], strides = [1, 1, 1]} : vector<4x1x128xf32> to vector<1x1x128xf32>
    %49 = vector.shape_cast %48 : vector<1x1x128xf32> to vector<1x128xf32>
    %50 = vector.broadcast %49 : vector<1x128xf32> to vector<16x128xf32>
    %51 = arith.mulf %43, %50 : vector<16x128xf32>
    %c32_i32 = arith.constant 32 : i32
    %52 = tpu.dynamic_rotate %43 by %c32_i32 dim 1 : vector<16x128xf32>, i32 -> vector<16x128xf32>
    %53 = vector.extract_strided_slice %45 {offsets = [1, 0, 0], sizes = [1, 1, 128], strides = [1, 1, 1]} : vector<4x1x128xf32> to vector<1x1x128xf32>
    %54 = vector.shape_cast %53 : vector<1x1x128xf32> to vector<1x128xf32>
    %55 = vector.broadcast %54 : vector<1x128xf32> to vector<16x128xf32>
    %56 = arith.mulf %52, %55 : vector<16x128xf32>
    %57 = arith.addf %51, %56 : vector<16x128xf32>
    %c64_i32 = arith.constant 64 : i32
    %58 = tpu.dynamic_rotate %43 by %c64_i32 dim 1 : vector<16x128xf32>, i32 -> vector<16x128xf32>
    %59 = vector.extract_strided_slice %45 {offsets = [2, 0, 0], sizes = [1, 1, 128], strides = [1, 1, 1]} : vector<4x1x128xf32> to vector<1x1x128xf32>
    %60 = vector.shape_cast %59 : vector<1x1x128xf32> to vector<1x128xf32>
    %61 = vector.broadcast %60 : vector<1x128xf32> to vector<16x128xf32>
    %62 = arith.mulf %58, %61 : vector<16x128xf32>
    %63 = arith.addf %57, %62 : vector<16x128xf32>
    %c96_i32 = arith.constant 96 : i32
    %64 = tpu.dynamic_rotate %43 by %c96_i32 dim 1 : vector<16x128xf32>, i32 -> vector<16x128xf32>
    %65 = vector.extract_strided_slice %45 {offsets = [3, 0, 0], sizes = [1, 1, 128], strides = [1, 1, 1]} : vector<4x1x128xf32> to vector<1x1x128xf32>
    %66 = vector.shape_cast %65 : vector<1x1x128xf32> to vector<1x128xf32>
    %67 = vector.broadcast %66 : vector<1x128xf32> to vector<16x128xf32>
    %68 = arith.mulf %64, %67 : vector<16x128xf32>
    %69 = arith.addf %63, %68 : vector<16x128xf32>
    %70 = vector.broadcast %47 : vector<1x128xf32> to vector<16x128xf32>
    %71 = arith.addf %69, %70 : vector<16x128xf32>
    %cst_31 = arith.constant 0.000000e+00 : f32
    %72 = vector.broadcast %cst_31 : f32 to vector<16x128xf32>
    %73 = arith.maximumf %71, %72 : vector<16x128xf32>
    %c0_32 = arith.constant 0 : index
    %c0_33 = arith.constant 0 : index
    %c0_34 = arith.constant 0 : index
    %c0_35 = arith.constant 0 : index
    %74 = vector.load %arg11[%c0_32, %c0_33, %c0_34, %c0_35] : memref<2x4x1x128xf32, #tpu.memory_space<vmem>>, vector<1x4x1x128xf32>
    %75 = vector.shape_cast %74 : vector<1x4x1x128xf32> to vector<4x1x128xf32>
    %c0_36 = arith.constant 0 : index
    %c0_37 = arith.constant 0 : index
    %c0_38 = arith.constant 0 : index
    %76 = vector.load %arg12[%c0_36, %c0_37, %c0_38] : memref<2x1x128xf32, #tpu.memory_space<vmem>>, vector<1x1x128xf32>
    %77 = vector.shape_cast %76 : vector<1x1x128xf32> to vector<1x128xf32>
    %78 = vector.extract_strided_slice %75 {offsets = [0, 0, 0], sizes = [1, 1, 128], strides = [1, 1, 1]} : vector<4x1x128xf32> to vector<1x1x128xf32>
    %79 = vector.shape_cast %78 : vector<1x1x128xf32> to vector<1x128xf32>
    %80 = vector.broadcast %79 : vector<1x128xf32> to vector<16x128xf32>
    %81 = arith.mulf %73, %80 : vector<16x128xf32>
    %c32_i32_39 = arith.constant 32 : i32
    %82 = tpu.dynamic_rotate %73 by %c32_i32_39 dim 1 : vector<16x128xf32>, i32 -> vector<16x128xf32>
    %83 = vector.extract_strided_slice %75 {offsets = [1, 0, 0], sizes = [1, 1, 128], strides = [1, 1, 1]} : vector<4x1x128xf32> to vector<1x1x128xf32>
    %84 = vector.shape_cast %83 : vector<1x1x128xf32> to vector<1x128xf32>
    %85 = vector.broadcast %84 : vector<1x128xf32> to vector<16x128xf32>
    %86 = arith.mulf %82, %85 : vector<16x128xf32>
    %87 = arith.addf %81, %86 : vector<16x128xf32>
    %c64_i32_40 = arith.constant 64 : i32
    %88 = tpu.dynamic_rotate %73 by %c64_i32_40 dim 1 : vector<16x128xf32>, i32 -> vector<16x128xf32>
    %89 = vector.extract_strided_slice %75 {offsets = [2, 0, 0], sizes = [1, 1, 128], strides = [1, 1, 1]} : vector<4x1x128xf32> to vector<1x1x128xf32>
    %90 = vector.shape_cast %89 : vector<1x1x128xf32> to vector<1x128xf32>
    %91 = vector.broadcast %90 : vector<1x128xf32> to vector<16x128xf32>
    %92 = arith.mulf %88, %91 : vector<16x128xf32>
    %93 = arith.addf %87, %92 : vector<16x128xf32>
    %c96_i32_41 = arith.constant 96 : i32
    %94 = tpu.dynamic_rotate %73 by %c96_i32_41 dim 1 : vector<16x128xf32>, i32 -> vector<16x128xf32>
    %95 = vector.extract_strided_slice %75 {offsets = [3, 0, 0], sizes = [1, 1, 128], strides = [1, 1, 1]} : vector<4x1x128xf32> to vector<1x1x128xf32>
    %96 = vector.shape_cast %95 : vector<1x1x128xf32> to vector<1x128xf32>
    %97 = vector.broadcast %96 : vector<1x128xf32> to vector<16x128xf32>
    %98 = arith.mulf %94, %97 : vector<16x128xf32>
    %99 = arith.addf %93, %98 : vector<16x128xf32>
    %100 = vector.broadcast %77 : vector<1x128xf32> to vector<16x128xf32>
    %101 = arith.addf %99, %100 : vector<16x128xf32>
    %102 = arith.addf %101, %35 : vector<16x128xf32>
    %c1 = arith.constant 1 : index
    %c0_42 = arith.constant 0 : index
    %c0_43 = arith.constant 0 : index
    %103 = vector.load %arg5[%c1, %c0_42, %c0_43] : memref<2x16x16xbf16, #tpu.memory_space<vmem>>, vector<1x16x16xbf16>
    %104 = vector.shape_cast %103 : vector<1x16x16xbf16> to vector<16x16xbf16>
    %105 = arith.truncf %102 : vector<16x128xf32> to vector<16x128xbf16>
    %cst_44 = arith.constant dense<0.000000e+00> : vector<16x128xf32>
    %106 = tpu.matmul %104, %105, %cst_44 {dimension_numbers = #tpu.dot_dimension_numbers<[1], [0], [0], [1], [0, 0, 1, 1], [], []>} : vector<16x16xbf16>, vector<16x128xbf16>, vector<16x128xf32> -> vector<16x128xf32>
    %c1_45 = arith.constant 1 : index
    %c0_46 = arith.constant 0 : index
    %c0_47 = arith.constant 0 : index
    %107 = vector.load %arg6[%c1_45, %c0_46, %c0_47] : memref<2x16x1xf32, #tpu.memory_space<vmem>>, vector<1x16x1xf32>
    %108 = vector.shape_cast %107 : vector<1x16x1xf32> to vector<16x1xf32>
    %109 = vector.broadcast %108 : vector<16x1xf32> to vector<16x128xf32>
    %110 = arith.addf %106, %109 : vector<16x128xf32>
    %cst_48 = arith.constant 0.000000e+00 : f32
    %111 = vector.broadcast %cst_48 : f32 to vector<16x128xf32>
    %112 = arith.maximumf %110, %111 : vector<16x128xf32>
    %113 = arith.addf %112, %102 : vector<16x128xf32>
    %c1_49 = arith.constant 1 : index
    %c0_50 = arith.constant 0 : index
    %c0_51 = arith.constant 0 : index
    %114 = vector.load %arg7[%c1_49, %c0_50, %c0_51] : memref<2x16x1xf32, #tpu.memory_space<vmem>>, vector<1x16x1xf32>
    %115 = vector.shape_cast %114 : vector<1x16x1xf32> to vector<16x1xf32>
    %116 = vector.broadcast %115 : vector<16x1xf32> to vector<16x128xf32>
    %117 = arith.mulf %113, %116 : vector<16x128xf32>
    %c1_52 = arith.constant 1 : index
    %c0_53 = arith.constant 0 : index
    %c0_54 = arith.constant 0 : index
    %118 = vector.load %arg8[%c1_52, %c0_53, %c0_54] : memref<2x16x1xf32, #tpu.memory_space<vmem>>, vector<1x16x1xf32>
    %119 = vector.shape_cast %118 : vector<1x16x1xf32> to vector<16x1xf32>
    %120 = vector.broadcast %119 : vector<16x1xf32> to vector<16x128xf32>
    %121 = arith.addf %117, %120 : vector<16x128xf32>
    %c1_55 = arith.constant 1 : index
    %c0_56 = arith.constant 0 : index
    %c0_57 = arith.constant 0 : index
    %c0_58 = arith.constant 0 : index
    %122 = vector.load %arg9[%c1_55, %c0_56, %c0_57, %c0_58] : memref<2x4x1x128xf32, #tpu.memory_space<vmem>>, vector<1x4x1x128xf32>
    %123 = vector.shape_cast %122 : vector<1x4x1x128xf32> to vector<4x1x128xf32>
    %c1_59 = arith.constant 1 : index
    %c0_60 = arith.constant 0 : index
    %c0_61 = arith.constant 0 : index
    %124 = vector.load %arg10[%c1_59, %c0_60, %c0_61] : memref<2x1x128xf32, #tpu.memory_space<vmem>>, vector<1x1x128xf32>
    %125 = vector.shape_cast %124 : vector<1x1x128xf32> to vector<1x128xf32>
    %126 = vector.extract_strided_slice %123 {offsets = [0, 0, 0], sizes = [1, 1, 128], strides = [1, 1, 1]} : vector<4x1x128xf32> to vector<1x1x128xf32>
    %127 = vector.shape_cast %126 : vector<1x1x128xf32> to vector<1x128xf32>
    %128 = vector.broadcast %127 : vector<1x128xf32> to vector<16x128xf32>
    %129 = arith.mulf %121, %128 : vector<16x128xf32>
    %c32_i32_62 = arith.constant 32 : i32
    %130 = tpu.dynamic_rotate %121 by %c32_i32_62 dim 1 : vector<16x128xf32>, i32 -> vector<16x128xf32>
    %131 = vector.extract_strided_slice %123 {offsets = [1, 0, 0], sizes = [1, 1, 128], strides = [1, 1, 1]} : vector<4x1x128xf32> to vector<1x1x128xf32>
    %132 = vector.shape_cast %131 : vector<1x1x128xf32> to vector<1x128xf32>
    %133 = vector.broadcast %132 : vector<1x128xf32> to vector<16x128xf32>
    %134 = arith.mulf %130, %133 : vector<16x128xf32>
    %135 = arith.addf %129, %134 : vector<16x128xf32>
    %c64_i32_63 = arith.constant 64 : i32
    %136 = tpu.dynamic_rotate %121 by %c64_i32_63 dim 1 : vector<16x128xf32>, i32 -> vector<16x128xf32>
    %137 = vector.extract_strided_slice %123 {offsets = [2, 0, 0], sizes = [1, 1, 128], strides = [1, 1, 1]} : vector<4x1x128xf32> to vector<1x1x128xf32>
    %138 = vector.shape_cast %137 : vector<1x1x128xf32> to vector<1x128xf32>
    %139 = vector.broadcast %138 : vector<1x128xf32> to vector<16x128xf32>
    %140 = arith.mulf %136, %139 : vector<16x128xf32>
    %141 = arith.addf %135, %140 : vector<16x128xf32>
    %c96_i32_64 = arith.constant 96 : i32
    %142 = tpu.dynamic_rotate %121 by %c96_i32_64 dim 1 : vector<16x128xf32>, i32 -> vector<16x128xf32>
    %143 = vector.extract_strided_slice %123 {offsets = [3, 0, 0], sizes = [1, 1, 128], strides = [1, 1, 1]} : vector<4x1x128xf32> to vector<1x1x128xf32>
    %144 = vector.shape_cast %143 : vector<1x1x128xf32> to vector<1x128xf32>
    %145 = vector.broadcast %144 : vector<1x128xf32> to vector<16x128xf32>
    %146 = arith.mulf %142, %145 : vector<16x128xf32>
    %147 = arith.addf %141, %146 : vector<16x128xf32>
    %148 = vector.broadcast %125 : vector<1x128xf32> to vector<16x128xf32>
    %149 = arith.addf %147, %148 : vector<16x128xf32>
    %cst_65 = arith.constant 0.000000e+00 : f32
    %150 = vector.broadcast %cst_65 : f32 to vector<16x128xf32>
    %151 = arith.maximumf %149, %150 : vector<16x128xf32>
    %c1_66 = arith.constant 1 : index
    %c0_67 = arith.constant 0 : index
    %c0_68 = arith.constant 0 : index
    %c0_69 = arith.constant 0 : index
    %152 = vector.load %arg11[%c1_66, %c0_67, %c0_68, %c0_69] : memref<2x4x1x128xf32, #tpu.memory_space<vmem>>, vector<1x4x1x128xf32>
    %153 = vector.shape_cast %152 : vector<1x4x1x128xf32> to vector<4x1x128xf32>
    %c1_70 = arith.constant 1 : index
    %c0_71 = arith.constant 0 : index
    %c0_72 = arith.constant 0 : index
    %154 = vector.load %arg12[%c1_70, %c0_71, %c0_72] : memref<2x1x128xf32, #tpu.memory_space<vmem>>, vector<1x1x128xf32>
    %155 = vector.shape_cast %154 : vector<1x1x128xf32> to vector<1x128xf32>
    %156 = vector.extract_strided_slice %153 {offsets = [0, 0, 0], sizes = [1, 1, 128], strides = [1, 1, 1]} : vector<4x1x128xf32> to vector<1x1x128xf32>
    %157 = vector.shape_cast %156 : vector<1x1x128xf32> to vector<1x128xf32>
    %158 = vector.broadcast %157 : vector<1x128xf32> to vector<16x128xf32>
    %159 = arith.mulf %151, %158 : vector<16x128xf32>
    %c32_i32_73 = arith.constant 32 : i32
    %160 = tpu.dynamic_rotate %151 by %c32_i32_73 dim 1 : vector<16x128xf32>, i32 -> vector<16x128xf32>
    %161 = vector.extract_strided_slice %153 {offsets = [1, 0, 0], sizes = [1, 1, 128], strides = [1, 1, 1]} : vector<4x1x128xf32> to vector<1x1x128xf32>
    %162 = vector.shape_cast %161 : vector<1x1x128xf32> to vector<1x128xf32>
    %163 = vector.broadcast %162 : vector<1x128xf32> to vector<16x128xf32>
    %164 = arith.mulf %160, %163 : vector<16x128xf32>
    %165 = arith.addf %159, %164 : vector<16x128xf32>
    %c64_i32_74 = arith.constant 64 : i32
    %166 = tpu.dynamic_rotate %151 by %c64_i32_74 dim 1 : vector<16x128xf32>, i32 -> vector<16x128xf32>
    %167 = vector.extract_strided_slice %153 {offsets = [2, 0, 0], sizes = [1, 1, 128], strides = [1, 1, 1]} : vector<4x1x128xf32> to vector<1x1x128xf32>
    %168 = vector.shape_cast %167 : vector<1x1x128xf32> to vector<1x128xf32>
    %169 = vector.broadcast %168 : vector<1x128xf32> to vector<16x128xf32>
    %170 = arith.mulf %166, %169 : vector<16x128xf32>
    %171 = arith.addf %165, %170 : vector<16x128xf32>
    %c96_i32_75 = arith.constant 96 : i32
    %172 = tpu.dynamic_rotate %151 by %c96_i32_75 dim 1 : vector<16x128xf32>, i32 -> vector<16x128xf32>
    %173 = vector.extract_strided_slice %153 {offsets = [3, 0, 0], sizes = [1, 1, 128], strides = [1, 1, 1]} : vector<4x1x128xf32> to vector<1x1x128xf32>
    %174 = vector.shape_cast %173 : vector<1x1x128xf32> to vector<1x128xf32>
    %175 = vector.broadcast %174 : vector<1x128xf32> to vector<16x128xf32>
    %176 = arith.mulf %172, %175 : vector<16x128xf32>
    %177 = arith.addf %171, %176 : vector<16x128xf32>
    %178 = vector.broadcast %155 : vector<1x128xf32> to vector<16x128xf32>
    %179 = arith.addf %177, %178 : vector<16x128xf32>
    %180 = arith.addf %179, %113 : vector<16x128xf32>
    %c0_76 = arith.constant 0 : index
    %c0_77 = arith.constant 0 : index
    %181 = vector.load %arg13[%c0_76, %c0_77] : memref<8x16xbf16, #tpu.memory_space<vmem>>, vector<8x16xbf16>
    %182 = arith.truncf %180 : vector<16x128xf32> to vector<16x128xbf16>
    %cst_78 = arith.constant dense<0.000000e+00> : vector<8x128xf32>
    %183 = tpu.matmul %181, %182, %cst_78 {dimension_numbers = #tpu.dot_dimension_numbers<[1], [0], [0], [1], [0, 0, 1, 1], [], []>} : vector<8x16xbf16>, vector<16x128xbf16>, vector<8x128xf32> -> vector<8x128xf32>
    %c0_79 = arith.constant 0 : index
    %c0_80 = arith.constant 0 : index
    %184 = vector.load %arg14[%c0_79, %c0_80] : memref<8x1xf32, #tpu.memory_space<vmem>>, vector<8x1xf32>
    %185 = vector.broadcast %184 : vector<8x1xf32> to vector<8x128xf32>
    %186 = arith.addf %183, %185 : vector<8x128xf32>
    %cst_81 = arith.constant 9.99999974E-6 : f32
    %187 = vector.broadcast %cst_81 : f32 to vector<1x128xf32>
    %188 = arith.addf %12, %187 : vector<1x128xf32>
    %189 = math.sqrt %188 : vector<1x128xf32>
    %c0_82 = arith.constant 0 : index
    %c0_83 = arith.constant 0 : index
    %190 = vector.load %arg3[%c0_82, %c0_83] : memref<1x128xf32, #tpu.memory_space<vmem>>, vector<1x128xf32>
    %191 = vector.broadcast %190 : vector<1x128xf32> to vector<8x128xf32>
    %192 = arith.subf %186, %191 : vector<8x128xf32>
    %c0_84 = arith.constant 0 : index
    %c0_85 = arith.constant 0 : index
    %193 = vector.load %arg4[%c0_84, %c0_85] : memref<1x128xf32, #tpu.memory_space<vmem>>, vector<1x128xf32>
    %194 = arith.mulf %193, %189 : vector<1x128xf32>
    %195 = vector.broadcast %194 : vector<1x128xf32> to vector<8x128xf32>
    %196 = arith.mulf %192, %195 : vector<8x128xf32>
    %197 = vector.broadcast %5 : vector<1x128xf32> to vector<8x128xf32>
    %198 = arith.addf %196, %197 : vector<8x128xf32>
    %c0_86 = arith.constant 0 : index
    %c0_87 = arith.constant 0 : index
    %c0_88 = arith.constant 0 : index
    %199 = vector.load %arg15[%c0_86, %c0_87, %c0_88] : memref<1x8x128xf32, #tpu.memory_space<vmem>>, vector<1x8x128xf32>
    %200 = vector.shape_cast %199 : vector<1x8x128xf32> to vector<8x128xf32>
    %201 = vector.shape_cast %198 : vector<8x128xf32> to vector<1x8x128xf32>
    tpu.vector_store %arg15[%c0_86, %c0_87, %c0_88], %201 {strides = array<i32>} : memref<1x8x128xf32, #tpu.memory_space<vmem>>, vector<1x8x128xf32>,
    return
  }
  func.func @transform_0(%arg0: i32) -> (i32, i32, i32) {
    %c0_i32 = arith.constant 0 : i32
    %c0_i32_0 = arith.constant 0 : i32
    %c0_i32_1 = arith.constant 0 : i32
    return %arg0, %c0_i32, %c0_i32_0 : i32, i32, i32
  }
  func.func @transform_1(%arg0: i32) -> (i32, i32) {
    %c0_i32 = arith.constant 0 : i32
    %c0_i32_0 = arith.constant 0 : i32
    %c0_i32_1 = arith.constant 0 : i32
    return %c0_i32, %c0_i32_0 : i32, i32
  }
  func.func @transform_2(%arg0: i32) -> (i32, i32) {
    %c0_i32 = arith.constant 0 : i32
    %c0_i32_0 = arith.constant 0 : i32
    %c0_i32_1 = arith.constant 0 : i32
    return %c0_i32, %c0_i32_0 : i32, i32
  }
  func.func @transform_3(%arg0: i32) -> (i32, i32) {
    %c0_i32 = arith.constant 0 : i32
    %c0_i32_0 = arith.constant 0 : i32
    %c0_i32_1 = arith.constant 0 : i32
    return %c0_i32, %c0_i32_0 : i32, i32
  }
  func.func @transform_4(%arg0: i32) -> (i32, i32, i32) {
    %c0_i32 = arith.constant 0 : i32
    %c0_i32_0 = arith.constant 0 : i32
    %c0_i32_1 = arith.constant 0 : i32
    %c0_i32_2 = arith.constant 0 : i32
    return %c0_i32, %c0_i32_0, %c0_i32_1 : i32, i32, i32
  }
  func.func @transform_5(%arg0: i32) -> (i32, i32, i32) {
    %c0_i32 = arith.constant 0 : i32
    %c0_i32_0 = arith.constant 0 : i32
    %c0_i32_1 = arith.constant 0 : i32
    %c0_i32_2 = arith.constant 0 : i32
    return %c0_i32, %c0_i32_0, %c0_i32_1 : i32, i32, i32
  }
  func.func @transform_6(%arg0: i32) -> (i32, i32, i32) {
    %c0_i32 = arith.constant 0 : i32
    %c0_i32_0 = arith.constant 0 : i32
    %c0_i32_1 = arith.constant 0 : i32
    %c0_i32_2 = arith.constant 0 : i32
    return %c0_i32, %c0_i32_0, %c0_i32_1 : i32, i32, i32
  }
  func.func @transform_7(%arg0: i32) -> (i32, i32, i32) {
    %c0_i32 = arith.constant 0 : i32
    %c0_i32_0 = arith.constant 0 : i32
    %c0_i32_1 = arith.constant 0 : i32
    %c0_i32_2 = arith.constant 0 : i32
    return %c0_i32, %c0_i32_0, %c0_i32_1 : i32, i32, i32
  }
  func.func @transform_8(%arg0: i32) -> (i32, i32, i32, i32) {
    %c0_i32 = arith.constant 0 : i32
    %c0_i32_0 = arith.constant 0 : i32
    %c0_i32_1 = arith.constant 0 : i32
    %c0_i32_2 = arith.constant 0 : i32
    %c0_i32_3 = arith.constant 0 : i32
    return %c0_i32, %c0_i32_0, %c0_i32_1, %c0_i32_2 : i32, i32, i32, i32
  }
  func.func @transform_9(%arg0: i32) -> (i32, i32, i32) {
    %c0_i32 = arith.constant 0 : i32
    %c0_i32_0 = arith.constant 0 : i32
    %c0_i32_1 = arith.constant 0 : i32
    %c0_i32_2 = arith.constant 0 : i32
    return %c0_i32, %c0_i32_0, %c0_i32_1 : i32, i32, i32
  }
  func.func @transform_10(%arg0: i32) -> (i32, i32, i32, i32) {
    %c0_i32 = arith.constant 0 : i32
    %c0_i32_0 = arith.constant 0 : i32
    %c0_i32_1 = arith.constant 0 : i32
    %c0_i32_2 = arith.constant 0 : i32
    %c0_i32_3 = arith.constant 0 : i32
    return %c0_i32, %c0_i32_0, %c0_i32_1, %c0_i32_2 : i32, i32, i32, i32
  }
  func.func @transform_11(%arg0: i32) -> (i32, i32, i32) {
    %c0_i32 = arith.constant 0 : i32
    %c0_i32_0 = arith.constant 0 : i32
    %c0_i32_1 = arith.constant 0 : i32
    %c0_i32_2 = arith.constant 0 : i32
    return %c0_i32, %c0_i32_0, %c0_i32_1 : i32, i32, i32
  }
  func.func @transform_12(%arg0: i32) -> (i32, i32) {
    %c0_i32 = arith.constant 0 : i32
    %c0_i32_0 = arith.constant 0 : i32
    %c0_i32_1 = arith.constant 0 : i32
    return %c0_i32, %c0_i32_0 : i32, i32
  }
  func.func @transform_13(%arg0: i32) -> (i32, i32) {
    %c0_i32 = arith.constant 0 : i32
    %c0_i32_0 = arith.constant 0 : i32
    %c0_i32_1 = arith.constant 0 : i32
    return %c0_i32, %c0_i32_0 : i32, i32
  }
  func.func @transform_14(%arg0: i32) -> (i32, i32, i32) {
    %c0_i32 = arith.constant 0 : i32
    %c0_i32_0 = arith.constant 0 : i32
    %c0_i32_1 = arith.constant 0 : i32
    return %arg0, %c0_i32, %c0_i32_0 : i32, i32, i32
  }
}

</mosaic_0001>

<llo_original>
// kernel: model_forward.1
$region0: #{model_forward.1}
  #allocation0 [shape = 'u32[]', space=smem, size = 0x4, offset = 0x4, fixed_abs, tag = 'smem constant byte address 0x4 - core index']
  #allocation1 [shape = 'u32[144,128]{1,0:T(1,128)}', space=vmem, size = 0x12000, scoped, tag = 'internal scratch']
  %s0 = inlined_call_operand.vmem [shape: f32[1,16,128], index: 0, kind: input, shape index: {}]
  %s1 = inlined_call_operand.vmem [shape: f32[1,128], index: 1, kind: input, shape index: {}]
  %s2 = inlined_call_operand.vmem [shape: f32[1,128], index: 2, kind: input, shape index: {}]
  %s3 = inlined_call_operand.vmem [shape: f32[1,128], index: 3, kind: input, shape index: {}]
  %s4 = inlined_call_operand.vmem [shape: bf16[2,16,16], index: 4, kind: input, shape index: {}]
  %s5 = inlined_call_operand.vmem [shape: f32[2,16,1], index: 5, kind: input, shape index: {}]
  %s6 = inlined_call_operand.vmem [shape: f32[2,16,1], index: 6, kind: input, shape index: {}]
  %s7 = inlined_call_operand.vmem [shape: f32[2,16,1], index: 7, kind: input, shape index: {}]
  %s8 = inlined_call_operand.vmem [shape: f32[2,4,1,128], index: 8, kind: input, shape index: {}]
  %s9 = inlined_call_operand.vmem [shape: f32[2,1,128], index: 9, kind: input, shape index: {}]
  %s10 = inlined_call_operand.vmem [shape: f32[2,4,1,128], index: 10, kind: input, shape index: {}]
  %s11 = inlined_call_operand.vmem [shape: f32[2,1,128], index: 11, kind: input, shape index: {}]
  %s12 = inlined_call_operand.vmem [shape: bf16[8,16], index: 12, kind: input, shape index: {}]
  %s13 = inlined_call_operand.vmem [shape: f32[8,1], index: 13, kind: input, shape index: {}]
  %s14 = inlined_call_operand.vmem [shape: f32[1,8,128], index: 14, kind: output, shape index: {}]
  %s15 = sld [smem:[#allocation0]]
  $region66: #{model_forward.1} parent=0
    _
  %s17 = ssub.s32 1, %s15
  %s18 = scalar_select 0, %s17, %s15
  // Predicated region
  $region2: #{model_forward.1} parent=0 // pred_check
    _
  $region3: #{model_forward.1} parent=0 // pred_check_branch
    %20 = sbr.rel (0) target = $region5
  $region4: #{model_forward.1} parent=0 // pred_region
    _
  $region5: #{model_forward.1} parent=0 // pred_fallthru
    _
  // Predicated region
  $region6: #{model_forward.1} parent=0 // pred_check
    _
  $region7: #{model_forward.1} parent=0 // pred_check_branch
    %22 = sbr.rel (0) target = $region9
  $region8: #{model_forward.1} parent=0 // pred_region
    _
  $region9: #{model_forward.1} parent=0 // pred_fallthru
    _
  // Predicated region
  $region10: #{model_forward.1} parent=0 // pred_check
    _
  $region11: #{model_forward.1} parent=0 // pred_check_branch
    %24 = sbr.rel (0) target = $region13
  $region12: #{model_forward.1} parent=0 // pred_region
    _
  $region13: #{model_forward.1} parent=0 // pred_fallthru
    _
  // Predicated region
  $region14: #{model_forward.1} parent=0 // pred_check
    _
  $region15: #{model_forward.1} parent=0 // pred_check_branch
    %26 = sbr.rel (0) target = $region17
  $region16: #{model_forward.1} parent=0 // pred_region
    _
  $region17: #{model_forward.1} parent=0 // pred_fallthru
    _
  // Predicated region
  $region18: #{model_forward.1} parent=0 // pred_check
    _
  $region19: #{model_forward.1} parent=0 // pred_check_branch
    %28 = sbr.rel (0) target = $region21
  $region20: #{model_forward.1} parent=0 // pred_region
    _
  $region21: #{model_forward.1} parent=0 // pred_fallthru
    _
  // Predicated region
  $region22: #{model_forward.1} parent=0 // pred_check
    _
  $region23: #{model_forward.1} parent=0 // pred_check_branch
    %30 = sbr.rel (0) target = $region25
  $region24: #{model_forward.1} parent=0 // pred_region
    _
  $region25: #{model_forward.1} parent=0 // pred_fallthru
    _
  // Predicated region
  $region26: #{model_forward.1} parent=0 // pred_check
    _
  $region27: #{model_forward.1} parent=0 // pred_check_branch
    %32 = sbr.rel (0) target = $region29
  $region28: #{model_forward.1} parent=0 // pred_region
    _
  $region29: #{model_forward.1} parent=0 // pred_fallthru
    _
  // Predicated region
  $region30: #{model_forward.1} parent=0 // pred_check
    _
  $region31: #{model_forward.1} parent=0 // pred_check_branch
    %34 = sbr.rel (0) target = $region33
  $region32: #{model_forward.1} parent=0 // pred_region
    _
  $region33: #{model_forward.1} parent=0 // pred_fallthru
    _
  // Predicated region
  $region34: #{model_forward.1} parent=0 // pred_check
    _
  $region35: #{model_forward.1} parent=0 // pred_check_branch
    %36 = sbr.rel (0) target = $region37
  $region36: #{model_forward.1} parent=0 // pred_region
    _
  $region37: #{model_forward.1} parent=0 // pred_fallthru
    _
  // Predicated region
  $region38: #{model_forward.1} parent=0 // pred_check
    _
  $region39: #{model_forward.1} parent=0 // pred_check_branch
    %38 = sbr.rel (0) target = $region41
  $region40: #{model_forward.1} parent=0 // pred_region
    _
  $region41: #{model_forward.1} parent=0 // pred_fallthru
    _
  // Predicated region
  $region42: #{model_forward.1} parent=0 // pred_check
    _
  $region43: #{model_forward.1} parent=0 // pred_check_branch
    %40 = sbr.rel (0) target = $region45
  $region44: #{model_forward.1} parent=0 // pred_region
    _
  $region45: #{model_forward.1} parent=0 // pred_fallthru
    _
  // Predicated region
  $region46: #{model_forward.1} parent=0 // pred_check
    _
  $region47: #{model_forward.1} parent=0 // pred_check_branch
    %42 = sbr.rel (0) target = $region49
  $region48: #{model_forward.1} parent=0 // pred_region
    _
  $region49: #{model_forward.1} parent=0 // pred_fallthru
    _
  // Predicated region
  $region50: #{model_forward.1} parent=0 // pred_check
    _
  $region51: #{model_forward.1} parent=0 // pred_check_branch
    %44 = sbr.rel (0) target = $region53
  $region52: #{model_forward.1} parent=0 // pred_region
    _
  $region53: #{model_forward.1} parent=0 // pred_fallthru
    _
  // Predicated region
  $region54: #{model_forward.1} parent=0 // pred_check
    _
  $region55: #{model_forward.1} parent=0 // pred_check_branch
    %46 = sbr.rel (0) target = $region57
  $region56: #{model_forward.1} parent=0 // pred_region
    _
  $region57: #{model_forward.1} parent=0 // pred_fallthru
    _
  %v48 = vld [vmem:[%s0] sm:$0xff]
  %v49 = vld [vmem:[%s0 + $0x8] sm:$0xff]
  %v50 = vadd.f32 %v48, %v49
  %v51 = vrot.slane %v50, 4
  %v52 = vadd.f32 %v50, %v51
  %v53 = vrot.slane %v52, 2
  %v54 = vadd.f32 %v52, %v53
  %v55 = vrot.slane %v54, 1
  %v56 = vadd.f32 %v54, %v55
  %v57 = vrcp.pop 16.0
  %v58 = vmul.f32 %v56, %v57
  %v59 = vsub.f32 %v48, %v58
  %v60 = vsub.f32 %v49, %v58
  %v61 = vmul.f32 %v59, %v59
  %v62 = vmul.f32 %v60, %v60
  %v63 = vadd.f32 %v61, %v62
  %v64 = vrot.slane %v63, 4
  %v65 = vadd.f32 %v63, %v64
  %v66 = vrot.slane %v65, 2
  %v67 = vadd.f32 %v65, %v66
  %v68 = vrot.slane %v67, 1
  %v69 = vadd.f32 %v67, %v68
  %v70 = vmul.f32 %v69, %v57
  %v71 = vadd.f32 %v70, 1e-05
  %v72 = vrsqrt.pop %v71
  %v73 = vld [vmem:[%s1] sm:$0x1]
  %v74 = vmul.f32 %v72, %v73
  %v75 = vlaneseq
  %v76 = vshrl.u32 %v75, 7
  %v77 = vsub.s32 0, %v76
  %v78 = vrot.slane %v74, %v77
  %v79 = vmul.f32 %v59, %v78
  %v80 = vmul.f32 %v60, %v78
  %v81 = vld [vmem:[%s2] sm:$0x1]
  %v83 = vlaneseq
  %v84 = vshrl.u32 %v83, 7
  %v85 = vsub.s32 0, %v84
  %v86 = vrot.slane %v81, %v85
  %v88 = vadd.f32 %v79, %v86
  %v89 = vadd.f32 %v80, %v86
  %v90 = vld [vmem:[%s4] sm:$0xf]
  %v91 = vld [vmem:[%s4 + $0x4] sm:$0xf]
  %v92 = vpack.c.bf16 %v89, %v88
  %v93 = vld [vmem:[%s5] sm:$0xff]
  %v94 = vld [vmem:[%s5 + $0x8] sm:$0xff]
  %96 = vset.pattern.permute.xlu0 0
  %97 = vperm.xlu0 %96, %v93
  %v98 = vpop.permute.xlu0 %97
  %101 = vset.pattern.permute.xlu0 0
  %102 = vperm.xlu0 %101, %v94
  %v103 = vpop.permute.xlu0 %102
  %v107 = vunpack.c.l.b16 %v90
  %v108 = vunpack.c.l.b16 %v91
  %v109 = vpack.c.b16 %v108, %v107
  %vm110 = vcmask 130048
  %v112 = vsel %vm110, %v109, 0
  %114 = vmatprep.subr.bf16.mxu0 0
  %115 = vmatpush1.bf16.msra.mxu0 0
  %116 = vmatprep.subr.bf16.mxu0 0
  %117 = vmatpush1.bf16.msra.mxu0 0
  %118 = vmatprep.subr.bf16.mxu0 0
  %119 = vmatpush1.bf16.msra.mxu0 0
  %120 = vmatprep.subr.bf16.mxu0 0
  %121 = vmatpush1.bf16.msra.mxu0 0
  %122 = vmatprep.subr.bf16.mxu0 0
  %123 = vmatpush1.bf16.msra.mxu0 0
  %124 = vmatprep.subr.bf16.mxu0 0
  %125 = vmatpush1.bf16.msra.mxu0 0
  %126 = vmatprep.subr.bf16.mxu0 0
  %127 = vmatpush1.bf16.msra.mxu0 0
  %128 = vmatprep.subr.bf16.mxu0 0
  %129 = vmatpush1.bf16.msra.mxu0 %v92
  %130 = vmatprep.subr.bf16.mxu0 0
  %131 = vmatpush2.bf16.msra.mxu0 0
  %132 = vmatprep.subr.bf16.mxu0 0
  %133 = vmatpush2.bf16.msra.mxu0 0
  %134 = vmatprep.subr.bf16.mxu0 0
  %135 = vmatpush2.bf16.msra.mxu0 0
  %136 = vmatprep.subr.bf16.mxu0 0
  %137 = vmatpush2.bf16.msra.mxu0 0
  %138 = vmatprep.subr.bf16.mxu0 0
  %139 = vmatpush2.bf16.msra.mxu0 0
  %140 = vmatprep.subr.bf16.mxu0 0
  %141 = vmatpush2.bf16.msra.mxu0 0
  %142 = vmatprep.subr.bf16.mxu0 0
  %143 = vmatpush2.bf16.msra.mxu0 0
  %144 = vmatprep.subr.bf16.mxu0 0
  %145 = vmatpush2.bf16.msra.mxu0 0
  %146 = vmatprep.mubr.bf16.mxu0 0
  %147 = vmatmul.mubr.bf16.gmra.mxu0 %v112
  %v148 = vpop.f32.mrf.mxu0
  %v149 = vadd.f32 %v98, %v148
  %v150 = vpop.f32.mrf.mxu0
  %v151 = vpop.f32.mrf.mxu0
  %v152 = vadd.f32 %v103, %v151
  %v153 = vpop.f32.mrf.mxu0
  %154 = vdwg.mxu0
  %v155 = vmax.f32 %v149, 0.0
  %v156 = vmax.f32 %v152, 0.0
  %v157 = vadd.f32 %v155, %v88
  %v158 = vadd.f32 %v156, %v89
  %v159 = vld [vmem:[%s6] sm:$0xff]
  %v160 = vld [vmem:[%s6 + $0x8] sm:$0xff]
  %162 = vset.pattern.permute.xlu0 0
  %163 = vperm.xlu0 %162, %v159
  %v164 = vpop.permute.xlu0 %163
  %167 = vset.pattern.permute.xlu0 0
  %168 = vperm.xlu0 %167, %v160
  %v169 = vpop.permute.xlu0 %168
  %v171 = vmul.f32 %v157, %v164
  %v172 = vmul.f32 %v158, %v169
  %v173 = vld [vmem:[%s7] sm:$0xff]
  %v174 = vld [vmem:[%s7 + $0x8] sm:$0xff]
  %176 = vset.pattern.permute.xlu0 0
  %177 = vperm.xlu0 %176, %v173
  %v178 = vpop.permute.xlu0 %177
  %181 = vset.pattern.permute.xlu0 0
  %182 = vperm.xlu0 %181, %v174
  %v183 = vpop.permute.xlu0 %182
  %v185 = vadd.f32 %v171, %v178
  %v186 = vadd.f32 %v172, %v183
  %v187 = vld [vmem:[%s8] sm:$0x1]
  %v188 = vld [vmem:[%s8 + $0x1] sm:$0x1]
  %v189 = vld [vmem:[%s8 + $0x2] sm:$0x1]
  %v190 = vld [vmem:[%s8 + $0x3] sm:$0x1]
  %v191 = vld [vmem:[%s9] sm:$0x1]
  %v193 = vlaneseq
  %v194 = vshrl.u32 %v193, 7
  %v195 = vsub.s32 0, %v194
  %v196 = vrot.slane %v187, %v195
  %v198 = vmul.f32 %v185, %v196
  %v199 = vmul.f32 %v186, %v196
  %200 = vrot.lane.b32.xlu0 %v185, 32
  %v201 = vpop.permute.xlu0 %200
  %202 = vrot.lane.b32.xlu0 %v186, 32
  %v203 = vpop.permute.xlu0 %202
  %v205 = vlaneseq
  %v206 = vshrl.u32 %v205, 7
  %v207 = vsub.s32 0, %v206
  %v208 = vrot.slane %v188, %v207
  %v210 = vmul.f32 %v201, %v208
  %v211 = vmul.f32 %v203, %v208
  %v212 = vadd.f32 %v198, %v210
  %v213 = vadd.f32 %v199, %v211
  %214 = vrot.lane.b32.xlu0 %v185, 64
  %v215 = vpop.permute.xlu0 %214
  %216 = vrot.lane.b32.xlu0 %v186, 64
  %v217 = vpop.permute.xlu0 %216
  %v219 = vlaneseq
  %v220 = vshrl.u32 %v219, 7
  %v221 = vsub.s32 0, %v220
  %v222 = vrot.slane %v189, %v221
  %v224 = vmul.f32 %v215, %v222
  %v225 = vmul.f32 %v217, %v222
  %v226 = vadd.f32 %v212, %v224
  %v227 = vadd.f32 %v213, %v225
  %228 = vrot.lane.b32.xlu0 %v185, 96
  %v229 = vpop.permute.xlu0 %228
  %230 = vrot.lane.b32.xlu0 %v186, 96
  %v231 = vpop.permute.xlu0 %230
  %v233 = vlaneseq
  %v234 = vshrl.u32 %v233, 7
  %v235 = vsub.s32 0, %v234
  %v236 = vrot.slane %v190, %v235
  %v238 = vmul.f32 %v229, %v236
  %v239 = vmul.f32 %v231, %v236
  %v240 = vadd.f32 %v226, %v238
  %v241 = vadd.f32 %v227, %v239
  %v243 = vlaneseq
  %v244 = vshrl.u32 %v243, 7
  %v245 = vsub.s32 0, %v244
  %v246 = vrot.slane %v191, %v245
  %v248 = vadd.f32 %v240, %v246
  %v249 = vadd.f32 %v241, %v246
  %v250 = vmax.f32 %v248, 0.0
  %v251 = vmax.f32 %v249, 0.0
  %v252 = vld [vmem:[%s10] sm:$0x1]
  %v253 = vld [vmem:[%s10 + $0x1] sm:$0x1]
  %v254 = vld [vmem:[%s10 + $0x2] sm:$0x1]
  %v255 = vld [vmem:[%s10 + $0x3] sm:$0x1]
  %v256 = vld [vmem:[%s11] sm:$0x1]
  %v258 = vlaneseq
  %v259 = vshrl.u32 %v258, 7
  %v260 = vsub.s32 0, %v259
  %v261 = vrot.slane %v252, %v260
  %v263 = vmul.f32 %v250, %v261
  %v264 = vmul.f32 %v251, %v261
  %265 = vrot.lane.b32.xlu0 %v250, 32
  %v266 = vpop.permute.xlu0 %265
  %267 = vrot.lane.b32.xlu0 %v251, 32
  %v268 = vpop.permute.xlu0 %267
  %v270 = vlaneseq
  %v271 = vshrl.u32 %v270, 7
  %v272 = vsub.s32 0, %v271
  %v273 = vrot.slane %v253, %v272
  %v275 = vmul.f32 %v266, %v273
  %v276 = vmul.f32 %v268, %v273
  %v277 = vadd.f32 %v263, %v275
  %v278 = vadd.f32 %v264, %v276
  %279 = vrot.lane.b32.xlu0 %v250, 64
  %v280 = vpop.permute.xlu0 %279
  %281 = vrot.lane.b32.xlu0 %v251, 64
  %v282 = vpop.permute.xlu0 %281
  %v284 = vlaneseq
  %v285 = vshrl.u32 %v284, 7
  %v286 = vsub.s32 0, %v285
  %v287 = vrot.slane %v254, %v286
  %v289 = vmul.f32 %v280, %v287
  %v290 = vmul.f32 %v282, %v287
  %v291 = vadd.f32 %v277, %v289
  %v292 = vadd.f32 %v278, %v290
  %293 = vrot.lane.b32.xlu0 %v250, 96
  %v294 = vpop.permute.xlu0 %293
  %295 = vrot.lane.b32.xlu0 %v251, 96
  %v296 = vpop.permute.xlu0 %295
  %v298 = vlaneseq
  %v299 = vshrl.u32 %v298, 7
  %v300 = vsub.s32 0, %v299
  %v301 = vrot.slane %v255, %v300
  %v303 = vmul.f32 %v294, %v301
  %v304 = vmul.f32 %v296, %v301
  %v305 = vadd.f32 %v291, %v303
  %v306 = vadd.f32 %v292, %v304
  %v308 = vlaneseq
  %v309 = vshrl.u32 %v308, 7
  %v310 = vsub.s32 0, %v309
  %v311 = vrot.slane %v256, %v310
  %v313 = vadd.f32 %v305, %v311
  %v314 = vadd.f32 %v306, %v311
  %v315 = vadd.f32 %v313, %v157
  %v316 = vadd.f32 %v314, %v158
  %s317 = scalar_lea.vmem %s4, 8
  %v318 = vld [vmem:[%s317] sm:$0xf]
  %v319 = vld [vmem:[%s317 + $0x4] sm:$0xf]
  %v320 = vpack.c.bf16 %v316, %v315
  %s321 = scalar_lea.vmem %s5, 16
  %v322 = vld [vmem:[%s321] sm:$0xff]
  %v323 = vld [vmem:[%s321 + $0x8] sm:$0xff]
  %325 = vset.pattern.permute.xlu0 0
  %326 = vperm.xlu0 %325, %v322
  %v327 = vpop.permute.xlu0 %326
  %330 = vset.pattern.permute.xlu0 0
  %331 = vperm.xlu0 %330, %v323
  %v332 = vpop.permute.xlu0 %331
  %v336 = vunpack.c.l.b16 %v318
  %v337 = vunpack.c.l.b16 %v319
  %v338 = vpack.c.b16 %v337, %v336
  %v340 = vsel %vm110, %v338, 0
  %342 = vmatprep.subr.bf16.mxu0 0
  %343 = vmatpush1.bf16.msra.mxu0 0
  %344 = vmatprep.subr.bf16.mxu0 0
  %345 = vmatpush1.bf16.msra.mxu0 0
  %346 = vmatprep.subr.bf16.mxu0 0
  %347 = vmatpush1.bf16.msra.mxu0 0
  %348 = vmatprep.subr.bf16.mxu0 0
  %349 = vmatpush1.bf16.msra.mxu0 0
  %350 = vmatprep.subr.bf16.mxu0 0
  %351 = vmatpush1.bf16.msra.mxu0 0
  %352 = vmatprep.subr.bf16.mxu0 0
  %353 = vmatpush1.bf16.msra.mxu0 0
  %354 = vmatprep.subr.bf16.mxu0 0
  %355 = vmatpush1.bf16.msra.mxu0 0
  %356 = vmatprep.subr.bf16.mxu0 0
  %357 = vmatpush1.bf16.msra.mxu0 %v320
  %358 = vmatprep.subr.bf16.mxu0 0
  %359 = vmatpush2.bf16.msra.mxu0 0
  %360 = vmatprep.subr.bf16.mxu0 0
  %361 = vmatpush2.bf16.msra.mxu0 0
  %362 = vmatprep.subr.bf16.mxu0 0
  %363 = vmatpush2.bf16.msra.mxu0 0
  %364 = vmatprep.subr.bf16.mxu0 0
  %365 = vmatpush2.bf16.msra.mxu0 0
  %366 = vmatprep.subr.bf16.mxu0 0
  %367 = vmatpush2.bf16.msra.mxu0 0
  %368 = vmatprep.subr.bf16.mxu0 0
  %369 = vmatpush2.bf16.msra.mxu0 0
  %370 = vmatprep.subr.bf16.mxu0 0
  %371 = vmatpush2.bf16.msra.mxu0 0
  %372 = vmatprep.subr.bf16.mxu0 0
  %373 = vmatpush2.bf16.msra.mxu0 0
  %374 = vmatprep.mubr.bf16.mxu0 0
  %375 = vmatmul.mubr.bf16.gmra.mxu0 %v340
  %v376 = vpop.f32.mrf.mxu0
  %v377 = vadd.f32 %v327, %v376
  %v378 = vpop.f32.mrf.mxu0
  %v379 = vpop.f32.mrf.mxu0
  %v380 = vadd.f32 %v332, %v379
  %v381 = vpop.f32.mrf.mxu0
  %382 = vdwg.mxu0
  %v383 = vmax.f32 %v377, 0.0
  %v384 = vmax.f32 %v380, 0.0
  %v385 = vadd.f32 %v383, %v315
  %v386 = vadd.f32 %v384, %v316
  %s387 = scalar_lea.vmem %s6, 16
  %v388 = vld [vmem:[%s387] sm:$0xff]
  %v389 = vld [vmem:[%s387 + $0x8] sm:$0xff]
  %391 = vset.pattern.permute.xlu0 0
  %392 = vperm.xlu0 %391, %v388
  %v393 = vpop.permute.xlu0 %392
  %396 = vset.pattern.permute.xlu0 0
  %397 = vperm.xlu0 %396, %v389
  %v398 = vpop.permute.xlu0 %397
  %v400 = vmul.f32 %v385, %v393
  %v401 = vmul.f32 %v386, %v398
  %s402 = scalar_lea.vmem %s7, 16
  %v403 = vld [vmem:[%s402] sm:$0xff]
  %v404 = vld [vmem:[%s402 + $0x8] sm:$0xff]
  %406 = vset.pattern.permute.xlu0 0
  %407 = vperm.xlu0 %406, %v403
  %v408 = vpop.permute.xlu0 %407
  %411 = vset.pattern.permute.xlu0 0
  %412 = vperm.xlu0 %411, %v404
  %v413 = vpop.permute.xlu0 %412
  %v415 = vadd.f32 %v400, %v408
  %v416 = vadd.f32 %v401, %v413
  %s417 = scalar_lea.vmem %s8, 4
  %v418 = vld [vmem:[%s417] sm:$0x1]
  %v419 = vld [vmem:[%s417 + $0x1] sm:$0x1]
  %v420 = vld [vmem:[%s417 + $0x2] sm:$0x1]
  %v421 = vld [vmem:[%s417 + $0x3] sm:$0x1]
  %s422 = scalar_lea.vmem %s9, 1
  %v423 = vld [vmem:[%s422] sm:$0x1]
  %v425 = vlaneseq
  %v426 = vshrl.u32 %v425, 7
  %v427 = vsub.s32 0, %v426
  %v428 = vrot.slane %v418, %v427
  %v430 = vmul.f32 %v415, %v428
  %v431 = vmul.f32 %v416, %v428
  %432 = vrot.lane.b32.xlu0 %v415, 32
  %v433 = vpop.permute.xlu0 %432
  %434 = vrot.lane.b32.xlu0 %v416, 32
  %v435 = vpop.permute.xlu0 %434
  %v437 = vlaneseq
  %v438 = vshrl.u32 %v437, 7
  %v439 = vsub.s32 0, %v438
  %v440 = vrot.slane %v419, %v439
  %v442 = vmul.f32 %v433, %v440
  %v443 = vmul.f32 %v435, %v440
  %v444 = vadd.f32 %v430, %v442
  %v445 = vadd.f32 %v431, %v443
  %446 = vrot.lane.b32.xlu0 %v415, 64
  %v447 = vpop.permute.xlu0 %446
  %448 = vrot.lane.b32.xlu0 %v416, 64
  %v449 = vpop.permute.xlu0 %448
  %v451 = vlaneseq
  %v452 = vshrl.u32 %v451, 7
  %v453 = vsub.s32 0, %v452
  %v454 = vrot.slane %v420, %v453
  %v456 = vmul.f32 %v447, %v454
  %v457 = vmul.f32 %v449, %v454
  %v458 = vadd.f32 %v444, %v456
  %v459 = vadd.f32 %v445, %v457
  %460 = vrot.lane.b32.xlu0 %v415, 96
  %v461 = vpop.permute.xlu0 %460
  %462 = vrot.lane.b32.xlu0 %v416, 96
  %v463 = vpop.permute.xlu0 %462
  %v465 = vlaneseq
  %v466 = vshrl.u32 %v465, 7
  %v467 = vsub.s32 0, %v466
  %v468 = vrot.slane %v421, %v467
  %v470 = vmul.f32 %v461, %v468
  %v471 = vmul.f32 %v463, %v468
  %v472 = vadd.f32 %v458, %v470
  %v473 = vadd.f32 %v459, %v471
  %v475 = vlaneseq
  %v476 = vshrl.u32 %v475, 7
  %v477 = vsub.s32 0, %v476
  %v478 = vrot.slane %v423, %v477
  %v480 = vadd.f32 %v472, %v478
  %v481 = vadd.f32 %v473, %v478
  %v482 = vmax.f32 %v480, 0.0
  %v483 = vmax.f32 %v481, 0.0
  %s484 = scalar_lea.vmem %s10, 4
  %v485 = vld [vmem:[%s484] sm:$0x1]
  %v486 = vld [vmem:[%s484 + $0x1] sm:$0x1]
  %v487 = vld [vmem:[%s484 + $0x2] sm:$0x1]
  %v488 = vld [vmem:[%s484 + $0x3] sm:$0x1]
  %s489 = scalar_lea.vmem %s11, 1
  %v490 = vld [vmem:[%s489] sm:$0x1]
  %v492 = vlaneseq
  %v493 = vshrl.u32 %v492, 7
  %v494 = vsub.s32 0, %v493
  %v495 = vrot.slane %v485, %v494
  %v497 = vmul.f32 %v482, %v495
  %v498 = vmul.f32 %v483, %v495
  %499 = vrot.lane.b32.xlu0 %v482, 32
  %v500 = vpop.permute.xlu0 %499
  %501 = vrot.lane.b32.xlu0 %v483, 32
  %v502 = vpop.permute.xlu0 %501
  %v504 = vlaneseq
  %v505 = vshrl.u32 %v504, 7
  %v506 = vsub.s32 0, %v505
  %v507 = vrot.slane %v486, %v506
  %v509 = vmul.f32 %v500, %v507
  %v510 = vmul.f32 %v502, %v507
  %v511 = vadd.f32 %v497, %v509
  %v512 = vadd.f32 %v498, %v510
  %513 = vrot.lane.b32.xlu0 %v482, 64
  %v514 = vpop.permute.xlu0 %513
  %515 = vrot.lane.b32.xlu0 %v483, 64
  %v516 = vpop.permute.xlu0 %515
  %v518 = vlaneseq
  %v519 = vshrl.u32 %v518, 7
  %v520 = vsub.s32 0, %v519
  %v521 = vrot.slane %v487, %v520
  %v523 = vmul.f32 %v514, %v521
  %v524 = vmul.f32 %v516, %v521
  %v525 = vadd.f32 %v511, %v523
  %v526 = vadd.f32 %v512, %v524
  %527 = vrot.lane.b32.xlu0 %v482, 96
  %v528 = vpop.permute.xlu0 %527
  %529 = vrot.lane.b32.xlu0 %v483, 96
  %v530 = vpop.permute.xlu0 %529
  %v532 = vlaneseq
  %v533 = vshrl.u32 %v532, 7
  %v534 = vsub.s32 0, %v533
  %v535 = vrot.slane %v488, %v534
  %v537 = vmul.f32 %v528, %v535
  %v538 = vmul.f32 %v530, %v535
  %v539 = vadd.f32 %v525, %v537
  %v540 = vadd.f32 %v526, %v538
  %v542 = vlaneseq
  %v543 = vshrl.u32 %v542, 7
  %v544 = vsub.s32 0, %v543
  %v545 = vrot.slane %v490, %v544
  %v547 = vadd.f32 %v539, %v545
  %v548 = vadd.f32 %v540, %v545
  %v549 = vadd.f32 %v547, %v385
  %v550 = vadd.f32 %v548, %v386
  %v551 = vld [vmem:[%s12] sm:$0xf]
  %v552 = vpack.c.bf16 %v550, %v549
  %v553 = vld [vmem:[%s13] sm:$0xff]
  %555 = vset.pattern.permute.xlu0 0
  %556 = vperm.xlu0 %555, %v553
  %v557 = vpop.permute.xlu0 %556
  %v560 = vsel %vm110, %v551, 0
  %562 = vmatprep.subr.bf16.mxu0 0
  %563 = vmatpush1.bf16.msra.mxu0 0
  %564 = vmatprep.subr.bf16.mxu0 0
  %565 = vmatpush1.bf16.msra.mxu0 0
  %566 = vmatprep.subr.bf16.mxu0 0
  %567 = vmatpush1.bf16.msra.mxu0 0
  %568 = vmatprep.subr.bf16.mxu0 0
  %569 = vmatpush1.bf16.msra.mxu0 0
  %570 = vmatprep.subr.bf16.mxu0 0
  %571 = vmatpush1.bf16.msra.mxu0 0
  %572 = vmatprep.subr.bf16.mxu0 0
  %573 = vmatpush1.bf16.msra.mxu0 0
  %574 = vmatprep.subr.bf16.mxu0 0
  %575 = vmatpush1.bf16.msra.mxu0 0
  %576 = vmatprep.subr.bf16.mxu0 0
  %577 = vmatpush1.bf16.msra.mxu0 %v552
  %578 = vmatprep.subr.bf16.mxu0 0
  %579 = vmatpush2.bf16.msra.mxu0 0
  %580 = vmatprep.subr.bf16.mxu0 0
  %581 = vmatpush2.bf16.msra.mxu0 0
  %582 = vmatprep.subr.bf16.mxu0 0
  %583 = vmatpush2.bf16.msra.mxu0 0
  %584 = vmatprep.subr.bf16.mxu0 0
  %585 = vmatpush2.bf16.msra.mxu0 0
  %586 = vmatprep.subr.bf16.mxu0 0
  %587 = vmatpush2.bf16.msra.mxu0 0
  %588 = vmatprep.subr.bf16.mxu0 0
  %589 = vmatpush2.bf16.msra.mxu0 0
  %590 = vmatprep.subr.bf16.mxu0 0
  %591 = vmatpush2.bf16.msra.mxu0 0
  %592 = vmatprep.subr.bf16.mxu0 0
  %593 = vmatpush2.bf16.msra.mxu0 0
  %594 = vmatprep.mubr.bf16.mxu0 0
  %595 = vmatmul.mubr.bf16.gmra.mxu0 %v560
  %v596 = vpop.f32.mrf.mxu0
  %v597 = vadd.f32 %v557, %v596
  %v598 = vpop.f32.mrf.mxu0
  %v599 = vpop.f32.mrf.mxu0
  %v600 = vpop.f32.mrf.mxu0
  %601 = vdwg.mxu0
  %v602 = vrsqrt.pop %v71
  %v603 = vmul.f32 %v71, %v602
  %vm604 = vcmp.eq.f32.partialorder %v71, inf
  %v605 = vsel %vm604, %v71, %v603
  %vm606 = vcmp.eq.f32.partialorder %v71, 0.0
  %v607 = vand.u32 %v71, 2147483648
  %v608 = vsel %vm606, %v607, %v605
  %v609 = vsub.f32 %v597, %v86
  %v610 = vld [vmem:[%s3] sm:$0x1]
  %v611 = vmul.f32 %v610, %v608
  %v613 = vlaneseq
  %v614 = vshrl.u32 %v613, 7
  %v615 = vsub.s32 0, %v614
  %v616 = vrot.slane %v611, %v615
  %v618 = vmul.f32 %v609, %v616
  %v619 = vadd.f32 %v618, %v58
  %620 = vst [vmem:[%s14] sm:$0xff] %v619
  // Predicated region
  $region58: #{model_forward.1} parent=0 // pred_check
    _
  $region59: #{model_forward.1} parent=0 // pred_check_branch
    %622 = sbr.rel (0) target = $region61
  $region60: #{model_forward.1} parent=0 // pred_region
    _
  $region61: #{model_forward.1} parent=0 // pred_fallthru
    _
  // Predicated region
  $region62: #{model_forward.1} parent=0 // pred_check
    _
  $region63: #{model_forward.1} parent=0 // pred_check_branch
    %624 = sbr.rel (0) target = $region65
  $region64: #{model_forward.1} parent=0 // pred_region
    _
  $region65: #{model_forward.1} parent=0 // pred_fallthru
    _

</llo_original>
